<compile_context>
chip_gen: v5e
topology: v5e:2x2
jax: 0.10.0
libtpu: 0.0.40
codegen_flags: <defaults>
</compile_context>

<pallas_src>
import functools

import jax
import jax.numpy as jnp
import numpy as np
from jax.experimental import pallas as pl
from jax.experimental.pallas import tpu as pltpu

BN_EPS = 1e-5
LEAKY_SLOPE = 0.2
LANE = 128


def _bn_leaky(h, gamma, beta):
    """Training-mode BatchNorm1d (biased batch variance) fused to one FMA,
    followed by LeakyReLU(0.2).  Variance via E[x^2] - mu^2; all math in f32.
    Works on the concatenated feature axis because stats are per-feature
    column (rna cols and atac cols never mix)."""
    mu = jnp.mean(h, axis=0, keepdims=True)                 # [1, F]
    ex2 = jnp.mean(h * h, axis=0, keepdims=True)            # [1, F]
    var = ex2 - mu * mu                                     # biased batch var
    scale = gamma * jax.lax.rsqrt(var + BN_EPS)             # EUP rsqrt
    offset = beta - mu * scale                              # [1, F]
    y = h * scale + offset                                  # 2 full-tile VALU ops
    return jnp.maximum(y, LEAKY_SLOPE * y)                  # LeakyReLU as one max


def _fused_encoder_kernel(x_ref, w1_ref, w2_ref, w3_ref, w4_ref, vec_ref, out_ref):
    f1 = w2_ref.shape[0]      # 2*hidden       (features after layers 1 and 2)
    f3 = w4_ref.shape[0]      # 2*(hidden//2)  (features after layer 3)
    n_out = w4_ref.shape[1]   # lane-padded 2*out_dim

    # ---- Layer 1: one block-diagonal matmul serves both encoders
    h = jnp.dot(x_ref[...], w1_ref[...], preferred_element_type=jnp.float32)
    h = _bn_leaky(h, vec_ref[0:1, :f1], vec_ref[1:2, :f1])

    # ---- Layer 2
    h = jnp.dot(h.astype(jnp.bfloat16), w2_ref[...],
                preferred_element_type=jnp.float32)
    h = _bn_leaky(h, vec_ref[2:3, :f1], vec_ref[3:4, :f1])

    # ---- Layer 3
    h = jnp.dot(h.astype(jnp.bfloat16), w3_ref[...],
                preferred_element_type=jnp.float32)
    h = _bn_leaky(h, vec_ref[4:5, :f3], vec_ref[5:6, :f3])

    # ---- Layer 4: Linear with bias, lane-dense [B, n_out] slab (unmasked vst)
    out = jnp.dot(h.astype(jnp.bfloat16), w4_ref[...],
                  preferred_element_type=jnp.float32) + vec_ref[6:7, :n_out]
    out_ref[...] = out.astype(out_ref.dtype)


def _vmem_spec():
    return pl.BlockSpec(memory_space=pltpu.MemorySpace.VMEM)


def _block_diag(a, b):
    ra, ca = a.shape
    rb, cb = b.shape
    top = jnp.concatenate([a, jnp.zeros((ra, cb), a.dtype)], axis=1)
    bot = jnp.concatenate([jnp.zeros((rb, ca), b.dtype), b], axis=1)
    return jnp.concatenate([top, bot], axis=0)


def _round_up(x, m):
    return -(-x // m) * m


def init_encoder_params(key, input_size, hidden_dim, out_dim):
    """Per-encoder params matching the PyTorch layer shapes.

    Weights stored as [in, out] (transpose of PyTorch's [out, in]) so the
    kernel can do x @ W directly.  Biases / BN params kept 2D [1, F].
    Returns (w1,b1,g1,be1, w2,b2,g2,be2, w3,b3,g3,be3, w4,b4).
    """
    dims = [
        (input_size, hidden_dim),
        (hidden_dim, hidden_dim),
        (hidden_dim, hidden_dim // 2),
        (hidden_dim // 2, out_dim),
    ]
    params = []
    for i, (d_in, d_out) in enumerate(dims):
        key, kw, kb = jax.random.split(key, 3)
        bound = 1.0 / float(np.sqrt(d_in))
        w = jax.random.uniform(kw, (d_in, d_out), jnp.float32, -bound, bound)
        b = jax.random.uniform(kb, (1, d_out), jnp.float32, -bound, bound)
        params.extend([w, b])
        if i < 3:  # BN after the first three linears
            params.extend([jnp.ones((1, d_out), jnp.float32),
                           jnp.zeros((1, d_out), jnp.float32)])
    return tuple(params)


def fuse_encoder_params(rna_params, atac_params):
    """One-time fusion of the two parameter sets (done outside the forward,
    zero per-call cost):
      * all four layers become block-diagonal weights  -> 1 MXU push / layer
      * weights cast to bf16 (f32 accumulation in-kernel)
      * w4/b4 lane-padded to a multiple of 128 for an unmasked output store
      * the 7 per-feature vectors packed into one [8, pack_w] f32 operand
      * pre-BN biases b1..b3 dropped (cancelled by training-mode BN)."""
    (w1r, _b1r, g1r, be1r, w2r, _b2r, g2r, be2r,
     w3r, _b3r, g3r, be3r, w4r, b4r) = rna_params
    (w1a, _b1a, g1a, be1a, w2a, _b2a, g2a, be2a,
     w3a, _b3a, g3a, be3a, w4a, b4a) = atac_params
    cat = lambda x, y: jnp.concatenate([x, y], axis=-1)

    w1 = _block_diag(w1r, w1a)          # [in_rna+in_atac, 2H]
    w2 = _block_diag(w2r, w2a)          # [2H, 2H]
    w3 = _block_diag(w3r, w3a)          # [2H, 2*(H//2)]
    w4 = _block_diag(w4r, w4a)          # [2*(H//2), 2*out_dim]
    b4 = cat(b4r, b4a)

    out2 = w4.shape[1]
    out_pad = _round_up(max(out2, LANE), LANE)
    w4 = jnp.pad(w4, ((0, 0), (0, out_pad - out2)))
    b4 = jnp.pad(b4, ((0, 0), (0, out_pad - out2)))

    g1, be1 = cat(g1r, g1a), cat(be1r, be1a)
    g2, be2 = cat(g2r, g2a), cat(be2r, be2a)
    g3, be3 = cat(g3r, g3a), cat(be3r, be3a)
    pack_w = _round_up(max(g1.shape[1], out_pad, LANE), LANE)

    def row(v):
        return jnp.pad(v.astype(jnp.float32), ((0, 0), (0, pack_w - v.shape[1])))

    # Row layout: 0:g1 1:be1 2:g2 3:be2 4:g3 5:be3 6:b4 7:zeros  -> [8, pack_w]
    vecs = jnp.concatenate(
        [row(v) for v in (g1, be1, g2, be2, g3, be3, b4)]
        + [jnp.zeros((1, pack_w), jnp.float32)], axis=0)

    bf16 = jnp.bfloat16
    return {
        "w1": w1.astype(bf16),
        "w2": w2.astype(bf16),
        "w3": w3.astype(bf16),
        "w4": w4.astype(bf16),
        "vecs": vecs,
    }


@functools.partial(jax.jit, static_argnames=("out_dim",))
def net_resid_encoder_forward(rna_data, atac_data, fused, *, out_dim):
    batch = rna_data.shape[0]
    # Wrapper-side concat + bf16 cast: LHS for the block-diagonal layer-1 dot.
    x = jnp.concatenate([rna_data, atac_data], axis=-1).astype(jnp.bfloat16)

    w1, w2, w3, w4, vecs = (fused["w1"], fused["w2"], fused["w3"],
                            fused["w4"], fused["vecs"])
    operands = (x, w1, w2, w3, w4, vecs)
    out_pad = w4.shape[1]

    # Advisory cost estimate: flops count only the logical (non-zero) halves
    # of the block-diagonal weights; bytes_accessed counts what is actually
    # DMA'd (zeros included).
    mm_terms = (w1.size + w2.size + w3.size) // 2 + w4.shape[0] * 2 * out_dim
    flops = 2 * batch * mm_terms
    transcendentals = w2.shape[0] + w3.shape[0] + w4.shape[0]   # 3x rsqrt rows
    bytes_accessed = (sum(int(a.size) * a.dtype.itemsize for a in operands)
                      + batch * out_pad * 4)

    out = pl.pallas_call(
        _fused_encoder_kernel,
        out_shape=jax.ShapeDtypeStruct((batch, out_pad), jnp.float32),
        in_specs=[_vmem_spec() for _ in operands],
        out_specs=_vmem_spec(),
        cost_estimate=pl.CostEstimate(
            flops=int(flops),
            transcendentals=int(transcendentals),
            bytes_accessed=int(bytes_accessed),
        ),
    )(*operands)

    return out[:, :out_dim], out[:, out_dim:2 * out_dim]


def _reference_encoder(x, params):
    """Pure-JAX f32 reference with full PyTorch train()-mode semantics
    (including the pre-BN biases that the kernel drops)."""
    (w1, b1, g1, be1, w2, b2, g2, be2, w3, b3, g3, be3, w4, b4) = params
    h = x
    for w, b, g, be in ((w1, b1, g1, be1), (w2, b2, g2, be2), (w3, b3, g3, be3)):
        h = jnp.dot(h, w, precision=jax.lax.Precision.HIGHEST) + b
        mu = jnp.mean(h, axis=0, keepdims=True)
        var = jnp.mean((h - mu) ** 2, axis=0, keepdims=True)
        h = g * ((h - mu) * jax.lax.rsqrt(var + BN_EPS)) + be
        h = jnp.where(h > 0, h, LEAKY_SLOPE * h)
    return jnp.dot(h, w4, precision=jax.lax.Precision.HIGHEST) + b4


if __name__ == "__main__":
    # Small shapes consistent with the module.
    batch = 8
    rna_input_size = 32
    atac_input_size = 24
    hidden_dim = 32
    out_dim = 8

    key = jax.random.PRNGKey(0)
    k_rna_x, k_atac_x, k_rna_p, k_atac_p = jax.random.split(key, 4)

    rna_data = jax.random.normal(k_rna_x, (batch, rna_input_size), jnp.float32)
    atac_data = jax.random.normal(k_atac_x, (batch, atac_input_size), jnp.float32)

    rna_params = init_encoder_params(k_rna_p, rna_input_size, hidden_dim, out_dim)
    atac_params = init_encoder_params(k_atac_p, atac_input_size, hidden_dim, out_dim)
    fused = fuse_encoder_params(rna_params, atac_params)

    rna_emb, atac_emb = net_resid_encoder_forward(
        rna_data, atac_data, fused, out_dim=out_dim)
    jax.block_until_ready((rna_emb, atac_emb))

    assert rna_emb.shape == (batch, out_dim)
    assert atac_emb.shape == (batch, out_dim)

    # Correctness check vs. the unfused f32 pure-JAX reference.  Tolerance is
    # slightly looser than before because the kernel feeds bf16 operands to
    # the MXU (f32 accumulation); BN/activation math stays in f32.
    ref_rna = _reference_encoder(rna_data, rna_params)
    ref_atac = _reference_encoder(atac_data, atac_params)
    np.testing.assert_allclose(np.asarray(rna_emb), np.asarray(ref_rna),
                               rtol=1e-2, atol=1e-2)
    np.testing.assert_allclose(np.asarray(atac_emb), np.asarray(ref_atac),
                               rtol=1e-2, atol=1e-2)

    print("KERNEL_OK")
</pallas_src>

<mosaic_0001>
module attributes {stable_mosaic.version = 11 : i64} {
  func.func @_fused_encoder_kernel(%arg0: memref<8x56xbf16, #tpu.memory_space<vmem>>, %arg1: memref<56x64xbf16, #tpu.memory_space<vmem>>, %arg2: memref<64x64xbf16, #tpu.memory_space<vmem>>, %arg3: memref<64x32xbf16, #tpu.memory_space<vmem>>, %arg4: memref<32x128xbf16, #tpu.memory_space<vmem>>, %arg5: memref<8x128xf32, #tpu.memory_space<vmem>>, %arg6: memref<8x128xf32, #tpu.memory_space<vmem>>) attributes {dimension_semantics = [], scalar_prefetch = 0 : i64, scratch_operands = 0 : i64, tpu.core_type = #tpu.core_type<tc>} {
    %c0 = arith.constant 0 : index
    %c0_0 = arith.constant 0 : index
    %0 = vector.load %arg0[%c0, %c0_0] : memref<8x56xbf16, #tpu.memory_space<vmem>>, vector<8x56xbf16>
    %c0_1 = arith.constant 0 : index
    %c0_2 = arith.constant 0 : index
    %1 = vector.load %arg1[%c0_1, %c0_2] : memref<56x64xbf16, #tpu.memory_space<vmem>>, vector<56x64xbf16>
    %cst = arith.constant dense<0.000000e+00> : vector<8x64xf32>
    %2 = tpu.matmul %0, %1, %cst {dimension_numbers = #tpu.dot_dimension_numbers<[1], [0], [0], [1], [0, 0, 1, 1], [], []>} : vector<8x56xbf16>, vector<56x64xbf16>, vector<8x64xf32> -> vector<8x64xf32>
    %c0_3 = arith.constant 0 : index
    %c0_4 = arith.constant 0 : index
    %3 = vector.load %arg5[%c0_3, %c0_4] : memref<8x128xf32, #tpu.memory_space<vmem>>, vector<1x64xf32>
    %c1 = arith.constant 1 : index
    %c0_5 = arith.constant 0 : index
    %4 = vector.load %arg5[%c1, %c0_5] : memref<8x128xf32, #tpu.memory_space<vmem>>, vector<1x64xf32>
    %cst_6 = arith.constant dense<0.000000e+00> : vector<64xf32>
    %5 = vector.multi_reduction <add>, %2, %cst_6 [0] : vector<8x64xf32> to vector<64xf32>
    %6 = vector.shape_cast %5 : vector<64xf32> to vector<1x64xf32>
    %cst_7 = arith.constant 8.000000e+00 : f32
    %7 = vector.broadcast %cst_7 : f32 to vector<1x64xf32>
    %8 = arith.divf %6, %7 : vector<1x64xf32>
    %9 = arith.mulf %2, %2 : vector<8x64xf32>
    %cst_8 = arith.constant dense<0.000000e+00> : vector<64xf32>
    %10 = vector.multi_reduction <add>, %9, %cst_8 [0] : vector<8x64xf32> to vector<64xf32>
    %11 = vector.shape_cast %10 : vector<64xf32> to vector<1x64xf32>
    %cst_9 = arith.constant 8.000000e+00 : f32
    %12 = vector.broadcast %cst_9 : f32 to vector<1x64xf32>
    %13 = arith.divf %11, %12 : vector<1x64xf32>
    %14 = arith.mulf %8, %8 : vector<1x64xf32>
    %15 = arith.subf %13, %14 : vector<1x64xf32>
    %cst_10 = arith.constant 9.99999974E-6 : f32
    %16 = vector.broadcast %cst_10 : f32 to vector<1x64xf32>
    %17 = arith.addf %15, %16 : vector<1x64xf32>
    %18 = math.rsqrt %17 : vector<1x64xf32>
    %19 = arith.mulf %3, %18 : vector<1x64xf32>
    %20 = arith.mulf %8, %19 : vector<1x64xf32>
    %21 = arith.subf %4, %20 : vector<1x64xf32>
    %22 = vector.broadcast %19 : vector<1x64xf32> to vector<8x64xf32>
    %23 = arith.mulf %2, %22 : vector<8x64xf32>
    %24 = vector.broadcast %21 : vector<1x64xf32> to vector<8x64xf32>
    %25 = arith.addf %23, %24 : vector<8x64xf32>
    %cst_11 = arith.constant 2.000000e-01 : f32
    %26 = vector.broadcast %cst_11 : f32 to vector<8x64xf32>
    %27 = arith.mulf %26, %25 : vector<8x64xf32>
    %28 = arith.maximumf %25, %27 : vector<8x64xf32>
    %29 = arith.truncf %28 : vector<8x64xf32> to vector<8x64xbf16>
    %c0_12 = arith.constant 0 : index
    %c0_13 = arith.constant 0 : index
    %30 = vector.load %arg2[%c0_12, %c0_13] : memref<64x64xbf16, #tpu.memory_space<vmem>>, vector<64x64xbf16>
    %cst_14 = arith.constant dense<0.000000e+00> : vector<8x64xf32>
    %31 = tpu.matmul %29, %30, %cst_14 {dimension_numbers = #tpu.dot_dimension_numbers<[1], [0], [0], [1], [0, 0, 1, 1], [], []>} : vector<8x64xbf16>, vector<64x64xbf16>, vector<8x64xf32> -> vector<8x64xf32>
    %c2 = arith.constant 2 : index
    %c0_15 = arith.constant 0 : index
    %32 = vector.load %arg5[%c2, %c0_15] : memref<8x128xf32, #tpu.memory_space<vmem>>, vector<1x64xf32>
    %c3 = arith.constant 3 : index
    %c0_16 = arith.constant 0 : index
    %33 = vector.load %arg5[%c3, %c0_16] : memref<8x128xf32, #tpu.memory_space<vmem>>, vector<1x64xf32>
    %cst_17 = arith.constant dense<0.000000e+00> : vector<64xf32>
    %34 = vector.multi_reduction <add>, %31, %cst_17 [0] : vector<8x64xf32> to vector<64xf32>
    %35 = vector.shape_cast %34 : vector<64xf32> to vector<1x64xf32>
    %cst_18 = arith.constant 8.000000e+00 : f32
    %36 = vector.broadcast %cst_18 : f32 to vector<1x64xf32>
    %37 = arith.divf %35, %36 : vector<1x64xf32>
    %38 = arith.mulf %31, %31 : vector<8x64xf32>
    %cst_19 = arith.constant dense<0.000000e+00> : vector<64xf32>
    %39 = vector.multi_reduction <add>, %38, %cst_19 [0] : vector<8x64xf32> to vector<64xf32>
    %40 = vector.shape_cast %39 : vector<64xf32> to vector<1x64xf32>
    %cst_20 = arith.constant 8.000000e+00 : f32
    %41 = vector.broadcast %cst_20 : f32 to vector<1x64xf32>
    %42 = arith.divf %40, %41 : vector<1x64xf32>
    %43 = arith.mulf %37, %37 : vector<1x64xf32>
    %44 = arith.subf %42, %43 : vector<1x64xf32>
    %cst_21 = arith.constant 9.99999974E-6 : f32
    %45 = vector.broadcast %cst_21 : f32 to vector<1x64xf32>
    %46 = arith.addf %44, %45 : vector<1x64xf32>
    %47 = math.rsqrt %46 : vector<1x64xf32>
    %48 = arith.mulf %32, %47 : vector<1x64xf32>
    %49 = arith.mulf %37, %48 : vector<1x64xf32>
    %50 = arith.subf %33, %49 : vector<1x64xf32>
    %51 = vector.broadcast %48 : vector<1x64xf32> to vector<8x64xf32>
    %52 = arith.mulf %31, %51 : vector<8x64xf32>
    %53 = vector.broadcast %50 : vector<1x64xf32> to vector<8x64xf32>
    %54 = arith.addf %52, %53 : vector<8x64xf32>
    %cst_22 = arith.constant 2.000000e-01 : f32
    %55 = vector.broadcast %cst_22 : f32 to vector<8x64xf32>
    %56 = arith.mulf %55, %54 : vector<8x64xf32>
    %57 = arith.maximumf %54, %56 : vector<8x64xf32>
    %58 = arith.truncf %57 : vector<8x64xf32> to vector<8x64xbf16>
    %c0_23 = arith.constant 0 : index
    %c0_24 = arith.constant 0 : index
    %59 = vector.load %arg3[%c0_23, %c0_24] : memref<64x32xbf16, #tpu.memory_space<vmem>>, vector<64x32xbf16>
    %cst_25 = arith.constant dense<0.000000e+00> : vector<8x32xf32>
    %60 = tpu.matmul %58, %59, %cst_25 {dimension_numbers = #tpu.dot_dimension_numbers<[1], [0], [0], [1], [0, 0, 1, 1], [], []>} : vector<8x64xbf16>, vector<64x32xbf16>, vector<8x32xf32> -> vector<8x32xf32>
    %c4 = arith.constant 4 : index
    %c0_26 = arith.constant 0 : index
    %61 = vector.load %arg5[%c4, %c0_26] : memref<8x128xf32, #tpu.memory_space<vmem>>, vector<1x32xf32>
    %c5 = arith.constant 5 : index
    %c0_27 = arith.constant 0 : index
    %62 = vector.load %arg5[%c5, %c0_27] : memref<8x128xf32, #tpu.memory_space<vmem>>, vector<1x32xf32>
    %cst_28 = arith.constant dense<0.000000e+00> : vector<32xf32>
    %63 = vector.multi_reduction <add>, %60, %cst_28 [0] : vector<8x32xf32> to vector<32xf32>
    %64 = vector.shape_cast %63 : vector<32xf32> to vector<1x32xf32>
    %cst_29 = arith.constant 8.000000e+00 : f32
    %65 = vector.broadcast %cst_29 : f32 to vector<1x32xf32>
    %66 = arith.divf %64, %65 : vector<1x32xf32>
    %67 = arith.mulf %60, %60 : vector<8x32xf32>
    %cst_30 = arith.constant dense<0.000000e+00> : vector<32xf32>
    %68 = vector.multi_reduction <add>, %67, %cst_30 [0] : vector<8x32xf32> to vector<32xf32>
    %69 = vector.shape_cast %68 : vector<32xf32> to vector<1x32xf32>
    %cst_31 = arith.constant 8.000000e+00 : f32
    %70 = vector.broadcast %cst_31 : f32 to vector<1x32xf32>
    %71 = arith.divf %69, %70 : vector<1x32xf32>
    %72 = arith.mulf %66, %66 : vector<1x32xf32>
    %73 = arith.subf %71, %72 : vector<1x32xf32>
    %cst_32 = arith.constant 9.99999974E-6 : f32
    %74 = vector.broadcast %cst_32 : f32 to vector<1x32xf32>
    %75 = arith.addf %73, %74 : vector<1x32xf32>
    %76 = math.rsqrt %75 : vector<1x32xf32>
    %77 = arith.mulf %61, %76 : vector<1x32xf32>
    %78 = arith.mulf %66, %77 : vector<1x32xf32>
    %79 = arith.subf %62, %78 : vector<1x32xf32>
    %80 = vector.broadcast %77 : vector<1x32xf32> to vector<8x32xf32>
    %81 = arith.mulf %60, %80 : vector<8x32xf32>
    %82 = vector.broadcast %79 : vector<1x32xf32> to vector<8x32xf32>
    %83 = arith.addf %81, %82 : vector<8x32xf32>
    %cst_33 = arith.constant 2.000000e-01 : f32
    %84 = vector.broadcast %cst_33 : f32 to vector<8x32xf32>
    %85 = arith.mulf %84, %83 : vector<8x32xf32>
    %86 = arith.maximumf %83, %85 : vector<8x32xf32>
    %87 = arith.truncf %86 : vector<8x32xf32> to vector<8x32xbf16>
    %c0_34 = arith.constant 0 : index
    %c0_35 = arith.constant 0 : index
    %88 = vector.load %arg4[%c0_34, %c0_35] : memref<32x128xbf16, #tpu.memory_space<vmem>>, vector<32x128xbf16>
    %cst_36 = arith.constant dense<0.000000e+00> : vector<8x128xf32>
    %89 = tpu.matmul %87, %88, %cst_36 {dimension_numbers = #tpu.dot_dimension_numbers<[1], [0], [0], [1], [0, 0, 1, 1], [], []>} : vector<8x32xbf16>, vector<32x128xbf16>, vector<8x128xf32> -> vector<8x128xf32>
    %c6 = arith.constant 6 : index
    %c0_37 = arith.constant 0 : index
    %90 = vector.load %arg5[%c6, %c0_37] : memref<8x128xf32, #tpu.memory_space<vmem>>, vector<1x128xf32>
    %91 = vector.broadcast %90 : vector<1x128xf32> to vector<8x128xf32>
    %92 = arith.addf %89, %91 : vector<8x128xf32>
    %c0_38 = arith.constant 0 : index
    %c0_39 = arith.constant 0 : index
    %93 = vector.load %arg6[%c0_38, %c0_39] : memref<8x128xf32, #tpu.memory_space<vmem>>, vector<8x128xf32>
    tpu.vector_store %arg6[%c0_38, %c0_39], %92 {strides = array<i32>} : memref<8x128xf32, #tpu.memory_space<vmem>>, vector<8x128xf32>,
    return
  }
}

</mosaic_0001>

<llo_original>
// kernel: net_resid_encoder_forward.1
$region0: #{net_resid_encoder_forward.1}
  #allocation0 [shape = 'u32[]', space=smem, size = 0x4, offset = 0x4, fixed_abs, tag = 'smem constant byte address 0x4 - core index']
  #allocation1 [shape = 'u32[72,128]{1,0:T(1,128)}', space=vmem, size = 0x9000, scoped, tag = 'internal scratch']
  %s0 = inlined_call_operand.vmem [shape: bf16[8,56], index: 0, kind: input, shape index: {}]
  %s1 = inlined_call_operand.vmem [shape: bf16[56,64], index: 1, kind: input, shape index: {}]
  %s2 = inlined_call_operand.vmem [shape: bf16[64,64], index: 2, kind: input, shape index: {}]
  %s3 = inlined_call_operand.vmem [shape: bf16[64,32], index: 3, kind: input, shape index: {}]
  %s4 = inlined_call_operand.vmem [shape: bf16[32,128], index: 4, kind: input, shape index: {}]
  %s5 = inlined_call_operand.vmem [shape: f32[8,128], index: 5, kind: input, shape index: {}]
  %s6 = inlined_call_operand.vmem [shape: f32[8,128], index: 6, kind: output, shape index: {}]
  %s7 = sld [smem:[#allocation0]]
  $region34: #{net_resid_encoder_forward.1} parent=0
    _
  %s9 = ssub.s32 1, %s7
  %s10 = scalar_select 0, %s9, %s7
  // Predicated region
  $region2: #{net_resid_encoder_forward.1} parent=0 // pred_check
    _
  $region3: #{net_resid_encoder_forward.1} parent=0 // pred_check_branch
    %12 = sbr.rel (0) target = $region5
  $region4: #{net_resid_encoder_forward.1} parent=0 // pred_region
    _
  $region5: #{net_resid_encoder_forward.1} parent=0 // pred_fallthru
    _
  // Predicated region
  $region6: #{net_resid_encoder_forward.1} parent=0 // pred_check
    _
  $region7: #{net_resid_encoder_forward.1} parent=0 // pred_check_branch
    %14 = sbr.rel (0) target = $region9
  $region8: #{net_resid_encoder_forward.1} parent=0 // pred_region
    _
  $region9: #{net_resid_encoder_forward.1} parent=0 // pred_fallthru
    _
  // Predicated region
  $region10: #{net_resid_encoder_forward.1} parent=0 // pred_check
    _
  $region11: #{net_resid_encoder_forward.1} parent=0 // pred_check_branch
    %16 = sbr.rel (0) target = $region13
  $region12: #{net_resid_encoder_forward.1} parent=0 // pred_region
    _
  $region13: #{net_resid_encoder_forward.1} parent=0 // pred_fallthru
    _
  // Predicated region
  $region14: #{net_resid_encoder_forward.1} parent=0 // pred_check
    _
  $region15: #{net_resid_encoder_forward.1} parent=0 // pred_check_branch
    %18 = sbr.rel (0) target = $region17
  $region16: #{net_resid_encoder_forward.1} parent=0 // pred_region
    _
  $region17: #{net_resid_encoder_forward.1} parent=0 // pred_fallthru
    _
  // Predicated region
  $region18: #{net_resid_encoder_forward.1} parent=0 // pred_check
    _
  $region19: #{net_resid_encoder_forward.1} parent=0 // pred_check_branch
    %20 = sbr.rel (0) target = $region21
  $region20: #{net_resid_encoder_forward.1} parent=0 // pred_region
    _
  $region21: #{net_resid_encoder_forward.1} parent=0 // pred_fallthru
    _
  // Predicated region
  $region22: #{net_resid_encoder_forward.1} parent=0 // pred_check
    _
  $region23: #{net_resid_encoder_forward.1} parent=0 // pred_check_branch
    %22 = sbr.rel (0) target = $region25
  $region24: #{net_resid_encoder_forward.1} parent=0 // pred_region
    _
  $region25: #{net_resid_encoder_forward.1} parent=0 // pred_fallthru
    _
  %v24 = vld [vmem:[%s0] sm:$0xf]
  %v25 = vld [vmem:[%s1] sm:$0xf]
  %v26 = vld [vmem:[%s1 + $0x4] sm:$0xf]
  %v27 = vld [vmem:[%s1 + $0x8] sm:$0xf]
  %v28 = vld [vmem:[%s1 + $0xc] sm:$0xf]
  %v29 = vld [vmem:[%s1 + $0x10] sm:$0xf]
  %v30 = vld [vmem:[%s1 + $0x14] sm:$0xf]
  %v31 = vld [vmem:[%s1 + $0x18] sm:$0xf]
  %v39 = vunpack.c.l.b16 %v25
  %v40 = vunpack.c.l.b16 %v26
  %v41 = vunpack.c.l.b16 %v27
  %v42 = vunpack.c.l.b16 %v28
  %v43 = vunpack.c.l.b16 %v29
  %v44 = vunpack.c.l.b16 %v30
  %v45 = vunpack.c.l.b16 %v31
  %v46 = vpack.c.b16 %v40, %v39
  %v47 = vpack.c.b16 %v42, %v41
  %v48 = vpack.c.b16 %v44, %v43
  %v49 = vpack.c.b16 %v45, %v45
  %vm53 = vcmask 457728
  %v55 = vsel %vm53, %v24, 0
  %vm57 = vcmask 1043456
  %v59 = vsel %vm57, %v49, 0
  %61 = vmatpush.bf16.msra.mxu0 0
  %62 = vmatpush.bf16.msra.mxu0 0
  %63 = vmatpush.bf16.msra.mxu0 0
  %64 = vmatpush.bf16.msra.mxu0 0
  %65 = vmatpush.bf16.msra.mxu0 %v59
  %66 = vmatpush.bf16.msra.mxu0 %v48
  %67 = vmatpush.bf16.msra.mxu0 %v47
  %68 = vmatpush.bf16.msra.mxu0 %v46
  %69 = vmatmul.bf16.gmra.mxu0 %v55
  %v70 = vpop.f32.mrf.mxu0
  %v71 = vadd.f32 0.0, %v70
  %v72 = vpop.f32.mrf.mxu0
  %73 = vdwg.mxu0
  %v74 = vld [vmem:[%s5] sm:$0x1]
  %v75 = vld [vmem:[%s5 + $0x1] sm:$0x1]
  %vm76 = vcmask 523264
  %v77 = vsel %vm76, %v71, 0.0
  %v78 = vrot.slane %v77, 4
  %v79 = vadd.f32 %v77, %v78
  %v80 = vrot.slane %v79, 2
  %v81 = vadd.f32 %v79, %v80
  %v82 = vrot.slane %v81, 1
  %v83 = vadd.f32 %v81, %v82
  %v84 = vrcp.pop 8.0
  %v85 = vmul.f32 8.0, %v84
  %v86 = vsub.f32 1.0, %v85
  %v87 = vmul.f32 %v84, %v86
  %v88 = vadd.f32 %v84, %v87
  %vm89 = vweird.f32 %v84
  %v90 = vsel %vm89, %v84, %v88
  %v91 = vmul.f32 %v83, %v90
  %v92 = vmul.f32 %v71, %v71
  %v93 = vsel %vm76, %v92, 0.0
  %v94 = vrot.slane %v93, 4
  %v95 = vadd.f32 %v93, %v94
  %v96 = vrot.slane %v95, 2
  %v97 = vadd.f32 %v95, %v96
  %v98 = vrot.slane %v97, 1
  %v99 = vadd.f32 %v97, %v98
  %v100 = vmul.f32 %v99, %v90
  %v101 = vmul.f32 %v91, %v91
  %v102 = vsub.f32 %v100, %v101
  %v103 = vadd.f32 %v102, 1e-05
  %v104 = vrsqrt.pop %v103
  %v105 = vmul.f32 %v104, %v103
  %v106 = vmul.f32 %v105, %v104
  %v107 = vmul.f32 0.5, %v106
  %v108 = vsub.f32 1.5, %v107
  %v109 = vmul.f32 %v104, %v108
  %vm110 = vweird.f32 %v103
  %vm111 = vweird.f32 %v104
  %vm112 = vmor %vm110, %vm111
  %v113 = vsel %vm112, %v104, %v109
  %v114 = vmul.f32 %v74, %v113
  %v115 = vmul.f32 %v91, %v114
  %v116 = vsub.f32 %v75, %v115
  %v117 = vperm.slane %v114, 0
  %v118 = vmul.f32 %v71, %v117
  %v119 = vperm.slane %v116, 0
  %v120 = vadd.f32 %v118, %v119
  %v121 = vmul.f32 %v120, 0.2
  %v122 = vmax.f32 %v120, %v121
  %v123 = vpack.c.bf16 %v122, %v122
  %v124 = vld [vmem:[%s2] sm:$0xf]
  %v125 = vld [vmem:[%s2 + $0x4] sm:$0xf]
  %v126 = vld [vmem:[%s2 + $0x8] sm:$0xf]
  %v127 = vld [vmem:[%s2 + $0xc] sm:$0xf]
  %v128 = vld [vmem:[%s2 + $0x10] sm:$0xf]
  %v129 = vld [vmem:[%s2 + $0x14] sm:$0xf]
  %v130 = vld [vmem:[%s2 + $0x18] sm:$0xf]
  %v131 = vld [vmem:[%s2 + $0x1c] sm:$0xf]
  %v140 = vunpack.c.l.b16 %v124
  %v141 = vunpack.c.l.b16 %v125
  %v142 = vunpack.c.l.b16 %v126
  %v143 = vunpack.c.l.b16 %v127
  %v144 = vunpack.c.l.b16 %v128
  %v145 = vunpack.c.l.b16 %v129
  %v146 = vunpack.c.l.b16 %v130
  %v147 = vunpack.c.l.b16 %v131
  %v148 = vpack.c.b16 %v141, %v140
  %v149 = vpack.c.b16 %v143, %v142
  %v150 = vpack.c.b16 %v145, %v144
  %v151 = vpack.c.b16 %v147, %v146
  %v157 = vsel %vm76, %v123, 0
  %159 = vmatpush.bf16.msra.mxu0 0
  %160 = vmatpush.bf16.msra.mxu0 0
  %161 = vmatpush.bf16.msra.mxu0 0
  %162 = vmatpush.bf16.msra.mxu0 0
  %163 = vmatpush.bf16.msra.mxu0 %v151
  %164 = vmatpush.bf16.msra.mxu0 %v150
  %165 = vmatpush.bf16.msra.mxu0 %v149
  %166 = vmatpush.bf16.msra.mxu0 %v148
  %167 = vmatmul.bf16.gmra.mxu0 %v157
  %v168 = vpop.f32.mrf.mxu0
  %v169 = vadd.f32 0.0, %v168
  %v170 = vpop.f32.mrf.mxu0
  %171 = vdwg.mxu0
  %v172 = vld [vmem:[%s5 + $0x2] sm:$0x1]
  %v173 = vld [vmem:[%s5 + $0x3] sm:$0x1]
  %v174 = vsel %vm76, %v169, 0.0
  %v175 = vrot.slane %v174, 4
  %v176 = vadd.f32 %v174, %v175
  %v177 = vrot.slane %v176, 2
  %v178 = vadd.f32 %v176, %v177
  %v179 = vrot.slane %v178, 1
  %v180 = vadd.f32 %v178, %v179
  %v181 = vmul.f32 %v180, %v90
  %v182 = vmul.f32 %v169, %v169
  %v183 = vsel %vm76, %v182, 0.0
  %v184 = vrot.slane %v183, 4
  %v185 = vadd.f32 %v183, %v184
  %v186 = vrot.slane %v185, 2
  %v187 = vadd.f32 %v185, %v186
  %v188 = vrot.slane %v187, 1
  %v189 = vadd.f32 %v187, %v188
  %v190 = vmul.f32 %v189, %v90
  %v191 = vmul.f32 %v181, %v181
  %v192 = vsub.f32 %v190, %v191
  %v193 = vadd.f32 %v192, 1e-05
  %v194 = vrsqrt.pop %v193
  %v195 = vmul.f32 %v194, %v193
  %v196 = vmul.f32 %v195, %v194
  %v197 = vmul.f32 0.5, %v196
  %v198 = vsub.f32 1.5, %v197
  %v199 = vmul.f32 %v194, %v198
  %vm200 = vweird.f32 %v193
  %vm201 = vweird.f32 %v194
  %vm202 = vmor %vm200, %vm201
  %v203 = vsel %vm202, %v194, %v199
  %v204 = vmul.f32 %v172, %v203
  %v205 = vmul.f32 %v181, %v204
  %v206 = vsub.f32 %v173, %v205
  %v207 = vperm.slane %v204, 0
  %v208 = vmul.f32 %v169, %v207
  %v209 = vperm.slane %v206, 0
  %v210 = vadd.f32 %v208, %v209
  %v211 = vmul.f32 %v210, 0.2
  %v212 = vmax.f32 %v210, %v211
  %v213 = vpack.c.bf16 %v212, %v212
  %v214 = vld [vmem:[%s3] sm:$0xf]
  %v215 = vld [vmem:[%s3 + $0x4] sm:$0xf]
  %v216 = vld [vmem:[%s3 + $0x8] sm:$0xf]
  %v217 = vld [vmem:[%s3 + $0xc] sm:$0xf]
  %v218 = vld [vmem:[%s3 + $0x10] sm:$0xf]
  %v219 = vld [vmem:[%s3 + $0x14] sm:$0xf]
  %v220 = vld [vmem:[%s3 + $0x18] sm:$0xf]
  %v221 = vld [vmem:[%s3 + $0x1c] sm:$0xf]
  %v230 = vunpack.c.l.b16 %v214
  %v231 = vunpack.c.l.b16 %v215
  %v232 = vunpack.c.l.b16 %v216
  %v233 = vunpack.c.l.b16 %v217
  %v234 = vunpack.c.l.b16 %v218
  %v235 = vunpack.c.l.b16 %v219
  %v236 = vunpack.c.l.b16 %v220
  %v237 = vunpack.c.l.b16 %v221
  %v238 = vpack.c.b16 %v231, %v230
  %v239 = vpack.c.b16 %v233, %v232
  %v240 = vpack.c.b16 %v235, %v234
  %v241 = vpack.c.b16 %v237, %v236
  %v247 = vsel %vm76, %v213, 0
  %249 = vmatpush.bf16.msra.mxu0 0
  %250 = vmatpush.bf16.msra.mxu0 0
  %251 = vmatpush.bf16.msra.mxu0 0
  %252 = vmatpush.bf16.msra.mxu0 0
  %253 = vmatpush.bf16.msra.mxu0 %v241
  %254 = vmatpush.bf16.msra.mxu0 %v240
  %255 = vmatpush.bf16.msra.mxu0 %v239
  %256 = vmatpush.bf16.msra.mxu0 %v238
  %257 = vmatmul.bf16.gmra.mxu0 %v247
  %v258 = vpop.f32.mrf.mxu0
  %v259 = vadd.f32 0.0, %v258
  %v260 = vpop.f32.mrf.mxu0
  %261 = vdwg.mxu0
  %v262 = vld [vmem:[%s5 + $0x4] sm:$0x1]
  %v263 = vld [vmem:[%s5 + $0x5] sm:$0x1]
  %vm264 = vcmask 261120
  %v265 = vsel %vm264, %v259, 0.0
  %v266 = vrot.slane %v265, 4
  %v267 = vadd.f32 %v265, %v266
  %v268 = vrot.slane %v267, 2
  %v269 = vadd.f32 %v267, %v268
  %v270 = vrot.slane %v269, 1
  %v271 = vadd.f32 %v269, %v270
  %v272 = vmul.f32 %v271, %v90
  %v273 = vmul.f32 %v259, %v259
  %v274 = vsel %vm264, %v273, 0.0
  %v275 = vrot.slane %v274, 4
  %v276 = vadd.f32 %v274, %v275
  %v277 = vrot.slane %v276, 2
  %v278 = vadd.f32 %v276, %v277
  %v279 = vrot.slane %v278, 1
  %v280 = vadd.f32 %v278, %v279
  %v281 = vmul.f32 %v280, %v90
  %v282 = vmul.f32 %v272, %v272
  %v283 = vsub.f32 %v281, %v282
  %v284 = vadd.f32 %v283, 1e-05
  %v285 = vrsqrt.pop %v284
  %v286 = vmul.f32 %v285, %v284
  %v287 = vmul.f32 %v286, %v285
  %v288 = vmul.f32 0.5, %v287
  %v289 = vsub.f32 1.5, %v288
  %v290 = vmul.f32 %v285, %v289
  %vm291 = vweird.f32 %v284
  %vm292 = vweird.f32 %v285
  %vm293 = vmor %vm291, %vm292
  %v294 = vsel %vm293, %v285, %v290
  %v295 = vmul.f32 %v262, %v294
  %v296 = vmul.f32 %v272, %v295
  %v297 = vsub.f32 %v263, %v296
  %v298 = vperm.slane %v295, 0
  %v299 = vmul.f32 %v259, %v298
  %v300 = vperm.slane %v297, 0
  %v301 = vadd.f32 %v299, %v300
  %v302 = vmul.f32 %v301, 0.2
  %v303 = vmax.f32 %v301, %v302
  %v304 = vpack.c.bf16 %v303, %v303
  %v305 = vld [vmem:[%s4] sm:$0xf]
  %v306 = vld [vmem:[%s4 + $0x4] sm:$0xf]
  %v307 = vld [vmem:[%s4 + $0x8] sm:$0xf]
  %v308 = vld [vmem:[%s4 + $0xc] sm:$0xf]
  %v309 = vld [vmem:[%s5 + $0x6] sm:$0x1]
  %v310 = vperm.slane %v309, 0
  %v315 = vunpack.c.l.b16 %v305
  %v316 = vunpack.c.l.b16 %v306
  %v317 = vunpack.c.l.b16 %v307
  %v318 = vunpack.c.l.b16 %v308
  %v319 = vpack.c.b16 %v316, %v315
  %v320 = vpack.c.b16 %v318, %v317
  %v324 = vsel %vm264, %v304, 0
  %326 = vmatpush.bf16.msra.mxu0 0
  %327 = vmatpush.bf16.msra.mxu0 0
  %328 = vmatpush.bf16.msra.mxu0 0
  %329 = vmatpush.bf16.msra.mxu0 0
  %330 = vmatpush.bf16.msra.mxu0 0
  %331 = vmatpush.bf16.msra.mxu0 0
  %332 = vmatpush.bf16.msra.mxu0 %v320
  %333 = vmatpush.bf16.msra.mxu0 %v319
  %334 = vmatmul.bf16.gmra.mxu0 %v324
  %v335 = vpop.f32.mrf.mxu0
  %v336 = vadd.f32 %v310, %v335
  %v337 = vpop.f32.mrf.mxu0
  %338 = vdwg.mxu0
  %339 = vst [vmem:[%s6] sm:$0xff] %v336
  // Predicated region
  $region26: #{net_resid_encoder_forward.1} parent=0 // pred_check
    _
  $region27: #{net_resid_encoder_forward.1} parent=0 // pred_check_branch
    %341 = sbr.rel (0) target = $region29
  $region28: #{net_resid_encoder_forward.1} parent=0 // pred_region
    _
  $region29: #{net_resid_encoder_forward.1} parent=0 // pred_fallthru
    _
  // Predicated region
  $region30: #{net_resid_encoder_forward.1} parent=0 // pred_check
    _
  $region31: #{net_resid_encoder_forward.1} parent=0 // pred_check_branch
    %343 = sbr.rel (0) target = $region33
  $region32: #{net_resid_encoder_forward.1} parent=0 // pred_region
    _
  $region33: #{net_resid_encoder_forward.1} parent=0 // pred_fallthru
    _

</llo_original>
